<compile_context>
chip_gen: v5e
topology: v5e:2x2
jax: 0.10.0
libtpu: 0.0.40
codegen_flags: <defaults>
</compile_context>

<pallas_src>
import functools

import jax
import jax.numpy as jnp
from jax import lax
from jax.experimental import pallas as pl
from jax.experimental.pallas import tpu as pltpu


def _round_up(n, m):
    return ((n + m - 1) // m) * m


def _make_dnn_kernel(num_layers: int, compute_dtype):
    """Fused MLP kernel.

    x arrives batch-major (TB, input_dim); the first layer contracts the
    feature axis of both operands so activations become feature-major
    (out, TB) with the batch on the 128 lanes.  Subsequent layers stay
    feature-major and the final (1, TB) store is lane-dense.

    Ref order:
      x_ref (TB, input_dim),
      [w_i (out_i, in_i), b_i (out_i, 1)] * num_layers,
      w_out_ref (1, last_dim),
      out_ref (1, TB)
    """

    def kernel(x_ref, *refs):
        out_ref = refs[-1]
        w_out_ref = refs[-2]
        layer_refs = refs[:-2]

        x = x_ref[...].astype(compute_dtype)  # (TB, in): in-kernel cast, no HBM copy
        if num_layers == 0:
            y = lax.dot_general(
                w_out_ref[...], x,
                dimension_numbers=(((1,), (1,)), ((), ())),
                preferred_element_type=jnp.float32)          # (1, TB)
        else:
            w0 = layer_refs[0][...]                           # (out0, in)
            b0 = layer_refs[1][...]                           # (out0, 1) f32 (bias+BN)
            z = lax.dot_general(
                w0, x, dimension_numbers=(((1,), (1,)), ((), ())),
                preferred_element_type=jnp.float32) + b0      # (out0, TB)
            h = jnp.maximum(z, 0.0).astype(compute_dtype)     # ReLU (dropout = id)
            for l in range(1, num_layers):
                w = layer_refs[2 * l][...]                    # (out, in)
                b = layer_refs[2 * l + 1][...]                # (out, 1)
                z = jnp.dot(w, h, preferred_element_type=jnp.float32) + b
                h = jnp.maximum(z, 0.0).astype(compute_dtype)
            y = jnp.dot(w_out_ref[...], h,
                        preferred_element_type=jnp.float32)   # (1, TB)
        out_ref[...] = y.astype(out_ref.dtype)

    return kernel


def init_dnn_params(key, input_dim, mlp_dims, use_bn):
    """Torch-equivalent init: Linear weight ~N(0, 0.01) stored (out, in),
    bias = 0; BatchNorm1d defaults (gamma=1, beta=0, mean=0, var=1)."""
    dims = [input_dim] + list(mlp_dims)
    raw_layers = []
    for i in range(len(mlp_dims)):
        key, wk = jax.random.split(key)
        layer = {
            "w": 0.01 * jax.random.normal(wk, (dims[i + 1], dims[i]), jnp.float32),
            "b": jnp.zeros((dims[i + 1],), jnp.float32),
        }
        if use_bn:
            layer.update(
                gamma=jnp.ones((dims[i + 1],), jnp.float32),
                beta=jnp.zeros((dims[i + 1],), jnp.float32),
                mean=jnp.zeros((dims[i + 1],), jnp.float32),
                var=jnp.ones((dims[i + 1],), jnp.float32),
            )
        raw_layers.append(layer)
    key, wk = jax.random.split(key)
    w_out = 0.01 * jax.random.normal(wk, (1, dims[-1]), jnp.float32)
    return raw_layers, w_out


def fuse_params(raw_layers, use_bn, eps=1e-5):
    """Fold eval-mode BN into the Linear: W' = scale*W, b' = scale*b + shift."""
    ws, bs = [], []
    for layer in raw_layers:
        w, b = layer["w"], layer["b"]
        if use_bn:
            scale = layer["gamma"] / jnp.sqrt(layer["var"] + eps)
            shift = layer["beta"] - layer["mean"] * scale
            w = w * scale[:, None]
            b = b * scale + shift
        ws.append(w)
        bs.append(b[:, None])  # (out, 1) column for feature-major broadcast
    return ws, bs


def _vmem_limit_bytes(tb, input_dim, mlp_dims, x_itemsize, x_buffers):
    """Explicit per-step VMEM budget with headroom, clamped so it is valid on
    v5e (16 MiB scoped default) and v7x (64 MiB physical)."""
    dims = [input_dim] + list(mlp_dims)
    x_bytes = x_buffers * tb * input_dim * x_itemsize          # streamed x tiles
    out_bytes = 2 * tb * 4                                     # (1, tb) f32, dbl-buf
    w_bytes = 0
    for i in range(len(mlp_dims)):
        w_bytes += dims[i + 1] * dims[i] * 2 + dims[i + 1] * 4  # bf16 W + f32 b
    w_bytes = 2 * (w_bytes + dims[-1] * 2)                     # + w_out, dbl-buf
    widest = max(dims) if dims else 1
    act_bytes = 2 * widest * tb * (4 + 2)                      # live f32 z + bf16 h
    total = x_bytes + out_bytes + w_bytes + act_bytes
    return int(min(64 << 20, max(16 << 20, 2 * total)))


@functools.partial(jax.jit, static_argnames=("tb", "compute_dtype", "x_buffers"))
def dnn_layer_forward(x, fused_ws, fused_bs, w_out, *, tb=8192,
                      compute_dtype=jnp.bfloat16, x_buffers=2):
    lead_shape = x.shape[:-1]
    input_dim = x.shape[-1]
    x2 = x.reshape(-1, input_dim)                  # supports nD inputs
    batch = x2.shape[0]
    num_layers = len(fused_ws)
    mlp_dims = tuple(w.shape[0] for w in fused_ws)

    # Batch tile: multiple of 128 lanes, capped at the rounded-up batch so tiny
    # batches don't over-allocate VMEM and padding stays small.  Prod note: on
    # v7x pick tb so the grid has >= 2 (ideally >= 4) steps for megacore.
    tb_eff = max(128, min(_round_up(tb, 128), _round_up(batch, 128)))
    padded = _round_up(batch, tb_eff)
    if padded != batch:
        x2 = jnp.pad(x2, ((0, padded - batch), (0, 0)))
    # NOTE: x stays batch-major f32 -- no wrapper transpose/cast HBM pass.

    x_spec_kwargs = {}
    if x_buffers != 2:
        x_spec_kwargs["pipeline_mode"] = pl.Buffered(x_buffers)
    in_specs = [pl.BlockSpec((tb_eff, input_dim), lambda i: (i, 0),
                             **x_spec_kwargs)]

    params = []
    for w, b in zip(fused_ws, fused_bs):
        wc = w.astype(compute_dtype)
        params.append(wc)
        in_specs.append(pl.BlockSpec(wc.shape, lambda i: (0, 0)))  # VMEM-resident
        params.append(b)                                           # keep bias f32
        in_specs.append(pl.BlockSpec(b.shape, lambda i: (0, 0)))
    w_out_c = w_out.astype(compute_dtype)
    params.append(w_out_c)
    in_specs.append(pl.BlockSpec(w_out_c.shape, lambda i: (0, 0)))

    kernel = _make_dnn_kernel(num_layers, compute_dtype)
    out = pl.pallas_call(
        kernel,
        out_shape=jax.ShapeDtypeStruct((1, padded), jnp.float32),
        grid=(padded // tb_eff,),
        in_specs=in_specs,
        out_specs=pl.BlockSpec((1, tb_eff), lambda i: (0, i)),
        compiler_params=pltpu.CompilerParams(
            dimension_semantics=("parallel",),   # megacore sharding on v7x
            vmem_limit_bytes=_vmem_limit_bytes(
                tb_eff, input_dim, mlp_dims, x2.dtype.itemsize,
                max(2, x_buffers)),
        ),
    )(x2, *params)
    return out[0, :batch].reshape(lead_shape + (1,))   # (batch, ..., 1)


def dnn_reference_f32(x, raw_layers, w_out, use_bn, eps=1e-5):
    """Pure-JAX eval-mode forward mirroring the PyTorch module (all f32)."""
    h = x.astype(jnp.float32)
    for layer in raw_layers:
        h = h @ layer["w"].T + layer["b"]
        if use_bn:
            h = (h - layer["mean"]) / jnp.sqrt(layer["var"] + eps) \
                * layer["gamma"] + layer["beta"]
        h = jnp.maximum(h, 0.0)
    return h @ w_out.T  # (batch, 1)


def dnn_reference_mimic(x, fused_ws, fused_bs, w_out, compute_dtype):
    """Same math / dtype path as the kernel (tight numerical check)."""
    h = x.T.astype(compute_dtype)
    for w, b in zip(fused_ws, fused_bs):
        z = jnp.dot(w.astype(compute_dtype), h,
                    preferred_element_type=jnp.float32) + b
        h = jnp.maximum(z, 0.0).astype(compute_dtype)
    y = jnp.dot(w_out.astype(compute_dtype), h,
                preferred_element_type=jnp.float32)
    return y.T  # (batch, 1)


if __name__ == "__main__":
    # Shapes consistent with the module: input_dim = num_fields * embed_dim
    batch = 8
    num_fields, embed_dim = 8, 4
    input_dim = num_fields * embed_dim          # 32
    mlp_dims = (32, 16)
    dropout_rate = 0.1                          # identity in eval mode
    use_bn = True

    key = jax.random.PRNGKey(0)
    key, xk, pk = jax.random.split(key, 3)
    x = jax.random.normal(xk, (batch, input_dim), jnp.float32)

    raw_layers, w_out = init_dnn_params(pk, input_dim, mlp_dims, use_bn)
    fused_ws, fused_bs = fuse_params(raw_layers, use_bn)

    # Default tb=8192 auto-caps to 128 for this tiny demo batch; in prod sweep
    # tb over 8192-32768 (v7x: keep grid >= 2 so both TensorCores get work).
    y = dnn_layer_forward(x, fused_ws, fused_bs, w_out,
                          compute_dtype=jnp.bfloat16)
    y = jax.block_until_ready(y)
    assert y.shape == (batch, 1), y.shape

    # Tight check against a reference with the exact same dtype path.
    y_mimic = dnn_reference_mimic(x, fused_ws, fused_bs, w_out, jnp.bfloat16)
    assert jnp.allclose(y, y_mimic, atol=1e-6, rtol=1e-2), (y, y_mimic)

    # Looser check against the full-f32 PyTorch-semantics reference.
    y_f32 = dnn_reference_f32(x, raw_layers, w_out, use_bn)
    assert jnp.allclose(y, y_f32, atol=1e-5, rtol=5e-2), (y, y_f32)

    print("KERNEL_OK")
</pallas_src>

<mosaic_0001>
module attributes {stable_mosaic.version = 11 : i64} {
  func.func @kernel(%arg0: i32, %arg1: memref<128x32xf32, #tpu.memory_space<vmem>>, %arg2: memref<32x32xbf16, #tpu.memory_space<vmem>>, %arg3: memref<32x1xf32, #tpu.memory_space<vmem>>, %arg4: memref<16x32xbf16, #tpu.memory_space<vmem>>, %arg5: memref<16x1xf32, #tpu.memory_space<vmem>>, %arg6: memref<1x16xbf16, #tpu.memory_space<vmem>>, %arg7: memref<1x128xf32, #tpu.memory_space<vmem>>) attributes {dimension_semantics = [#tpu.dimension_semantics<parallel>], iteration_bounds = array<i64: 1>, scalar_prefetch = 0 : i64, scratch_operands = 0 : i64, tpu.core_type = #tpu.core_type<tc>, window_params = [{transform_indices = @transform_0, window_bounds = array<i64: 128, 32>}, {pipeline_mode = #tpu.pipeline_mode<synchronous>, transform_indices = @transform_1, window_bounds = array<i64: 32, 32>}, {pipeline_mode = #tpu.pipeline_mode<synchronous>, transform_indices = @transform_2, window_bounds = array<i64: 32, 1>}, {pipeline_mode = #tpu.pipeline_mode<synchronous>, transform_indices = @transform_3, window_bounds = array<i64: 16, 32>}, {pipeline_mode = #tpu.pipeline_mode<synchronous>, transform_indices = @transform_4, window_bounds = array<i64: 16, 1>}, {pipeline_mode = #tpu.pipeline_mode<synchronous>, transform_indices = @transform_5, window_bounds = array<i64: 1, 16>}, {transform_indices = @transform_6, window_bounds = array<i64: 1, 128>}]} {
    %c0 = arith.constant 0 : index
    %c0_0 = arith.constant 0 : index
    %0 = vector.load %arg1[%c0, %c0_0] : memref<128x32xf32, #tpu.memory_space<vmem>>, vector<128x32xf32>
    %1 = arith.truncf %0 : vector<128x32xf32> to vector<128x32xbf16>
    %c0_1 = arith.constant 0 : index
    %c0_2 = arith.constant 0 : index
    %2 = vector.load %arg2[%c0_1, %c0_2] : memref<32x32xbf16, #tpu.memory_space<vmem>>, vector<32x32xbf16>
    %c0_3 = arith.constant 0 : index
    %c0_4 = arith.constant 0 : index
    %3 = vector.load %arg3[%c0_3, %c0_4] : memref<32x1xf32, #tpu.memory_space<vmem>>, vector<32x1xf32>
    %cst = arith.constant dense<0.000000e+00> : vector<32x128xf32>
    %4 = tpu.matmul %2, %1, %cst {dimension_numbers = #tpu.dot_dimension_numbers<[1], [1], [0], [0], [0, 0, 1, 0], [], []>} : vector<32x32xbf16>, vector<128x32xbf16>, vector<32x128xf32> -> vector<32x128xf32>
    %5 = vector.broadcast %3 : vector<32x1xf32> to vector<32x128xf32>
    %6 = arith.addf %4, %5 : vector<32x128xf32>
    %cst_5 = arith.constant 0.000000e+00 : f32
    %7 = vector.broadcast %cst_5 : f32 to vector<32x128xf32>
    %8 = arith.maximumf %6, %7 : vector<32x128xf32>
    %9 = arith.truncf %8 : vector<32x128xf32> to vector<32x128xbf16>
    %c0_6 = arith.constant 0 : index
    %c0_7 = arith.constant 0 : index
    %10 = vector.load %arg4[%c0_6, %c0_7] : memref<16x32xbf16, #tpu.memory_space<vmem>>, vector<16x32xbf16>
    %c0_8 = arith.constant 0 : index
    %c0_9 = arith.constant 0 : index
    %11 = vector.load %arg5[%c0_8, %c0_9] : memref<16x1xf32, #tpu.memory_space<vmem>>, vector<16x1xf32>
    %cst_10 = arith.constant dense<0.000000e+00> : vector<16x128xf32>
    %12 = tpu.matmul %10, %9, %cst_10 {dimension_numbers = #tpu.dot_dimension_numbers<[1], [0], [0], [1], [0, 0, 1, 1], [], []>} : vector<16x32xbf16>, vector<32x128xbf16>, vector<16x128xf32> -> vector<16x128xf32>
    %13 = vector.broadcast %11 : vector<16x1xf32> to vector<16x128xf32>
    %14 = arith.addf %12, %13 : vector<16x128xf32>
    %cst_11 = arith.constant 0.000000e+00 : f32
    %15 = vector.broadcast %cst_11 : f32 to vector<16x128xf32>
    %16 = arith.maximumf %14, %15 : vector<16x128xf32>
    %17 = arith.truncf %16 : vector<16x128xf32> to vector<16x128xbf16>
    %c0_12 = arith.constant 0 : index
    %c0_13 = arith.constant 0 : index
    %18 = vector.load %arg6[%c0_12, %c0_13] : memref<1x16xbf16, #tpu.memory_space<vmem>>, vector<1x16xbf16>
    %cst_14 = arith.constant dense<0.000000e+00> : vector<1x128xf32>
    %19 = tpu.matmul %18, %17, %cst_14 {dimension_numbers = #tpu.dot_dimension_numbers<[1], [0], [0], [1], [0, 0, 1, 1], [], []>} : vector<1x16xbf16>, vector<16x128xbf16>, vector<1x128xf32> -> vector<1x128xf32>
    %c0_15 = arith.constant 0 : index
    %c0_16 = arith.constant 0 : index
    %20 = vector.load %arg7[%c0_15, %c0_16] : memref<1x128xf32, #tpu.memory_space<vmem>>, vector<1x128xf32>
    tpu.vector_store %arg7[%c0_15, %c0_16], %19 {strides = array<i32>} : memref<1x128xf32, #tpu.memory_space<vmem>>, vector<1x128xf32>,
    return
  }
  func.func @transform_0(%arg0: i32) -> (i32, i32) {
    %c0_i32 = arith.constant 0 : i32
    %c0_i32_0 = arith.constant 0 : i32
    return %arg0, %c0_i32 : i32, i32
  }
  func.func @transform_1(%arg0: i32) -> (i32, i32) {
    %c0_i32 = arith.constant 0 : i32
    %c0_i32_0 = arith.constant 0 : i32
    %c0_i32_1 = arith.constant 0 : i32
    return %c0_i32, %c0_i32_0 : i32, i32
  }
  func.func @transform_2(%arg0: i32) -> (i32, i32) {
    %c0_i32 = arith.constant 0 : i32
    %c0_i32_0 = arith.constant 0 : i32
    %c0_i32_1 = arith.constant 0 : i32
    return %c0_i32, %c0_i32_0 : i32, i32
  }
  func.func @transform_3(%arg0: i32) -> (i32, i32) {
    %c0_i32 = arith.constant 0 : i32
    %c0_i32_0 = arith.constant 0 : i32
    %c0_i32_1 = arith.constant 0 : i32
    return %c0_i32, %c0_i32_0 : i32, i32
  }
  func.func @transform_4(%arg0: i32) -> (i32, i32) {
    %c0_i32 = arith.constant 0 : i32
    %c0_i32_0 = arith.constant 0 : i32
    %c0_i32_1 = arith.constant 0 : i32
    return %c0_i32, %c0_i32_0 : i32, i32
  }
  func.func @transform_5(%arg0: i32) -> (i32, i32) {
    %c0_i32 = arith.constant 0 : i32
    %c0_i32_0 = arith.constant 0 : i32
    %c0_i32_1 = arith.constant 0 : i32
    return %c0_i32, %c0_i32_0 : i32, i32
  }
  func.func @transform_6(%arg0: i32) -> (i32, i32) {
    %c0_i32 = arith.constant 0 : i32
    %c0_i32_0 = arith.constant 0 : i32
    return %c0_i32, %arg0 : i32, i32
  }
}

</mosaic_0001>

<llo_original>
// kernel: dnn_layer_forward.1
$region0: #{dnn_layer_forward.1}
  #allocation0 [shape = 'u32[]', space=smem, size = 0x4, offset = 0x4, fixed_abs, tag = 'smem constant byte address 0x4 - core index']
  #allocation1 [shape = 'u32[72,128]{1,0:T(1,128)}', space=vmem, size = 0x9000, scoped, tag = 'internal scratch']
  %s0 = inlined_call_operand.vmem [shape: f32[128,32], index: 0, kind: input, shape index: {}]
  %s1 = inlined_call_operand.vmem [shape: bf16[32,32], index: 1, kind: input, shape index: {}]
  %s2 = inlined_call_operand.vmem [shape: f32[32,1], index: 2, kind: input, shape index: {}]
  %s3 = inlined_call_operand.vmem [shape: bf16[16,32], index: 3, kind: input, shape index: {}]
  %s4 = inlined_call_operand.vmem [shape: f32[16,1], index: 4, kind: input, shape index: {}]
  %s5 = inlined_call_operand.vmem [shape: bf16[1,16], index: 5, kind: input, shape index: {}]
  %s6 = inlined_call_operand.vmem [shape: f32[1,128], index: 6, kind: output, shape index: {}]
  %s7 = sld [smem:[#allocation0]]
  $region34: #{dnn_layer_forward.1} parent=0
    _
  %s9 = ssub.s32 1, %s7
  %s10 = scalar_select 0, %s9, %s7
  // Predicated region
  $region2: #{dnn_layer_forward.1} parent=0 // pred_check
    _
  $region3: #{dnn_layer_forward.1} parent=0 // pred_check_branch
    %12 = sbr.rel (0) target = $region5
  $region4: #{dnn_layer_forward.1} parent=0 // pred_region
    _
  $region5: #{dnn_layer_forward.1} parent=0 // pred_fallthru
    _
  // Predicated region
  $region6: #{dnn_layer_forward.1} parent=0 // pred_check
    _
  $region7: #{dnn_layer_forward.1} parent=0 // pred_check_branch
    %14 = sbr.rel (0) target = $region9
  $region8: #{dnn_layer_forward.1} parent=0 // pred_region
    _
  $region9: #{dnn_layer_forward.1} parent=0 // pred_fallthru
    _
  // Predicated region
  $region10: #{dnn_layer_forward.1} parent=0 // pred_check
    _
  $region11: #{dnn_layer_forward.1} parent=0 // pred_check_branch
    %16 = sbr.rel (0) target = $region13
  $region12: #{dnn_layer_forward.1} parent=0 // pred_region
    _
  $region13: #{dnn_layer_forward.1} parent=0 // pred_fallthru
    _
  // Predicated region
  $region14: #{dnn_layer_forward.1} parent=0 // pred_check
    _
  $region15: #{dnn_layer_forward.1} parent=0 // pred_check_branch
    %18 = sbr.rel (0) target = $region17
  $region16: #{dnn_layer_forward.1} parent=0 // pred_region
    _
  $region17: #{dnn_layer_forward.1} parent=0 // pred_fallthru
    _
  // Predicated region
  $region18: #{dnn_layer_forward.1} parent=0 // pred_check
    _
  $region19: #{dnn_layer_forward.1} parent=0 // pred_check_branch
    %20 = sbr.rel (0) target = $region21
  $region20: #{dnn_layer_forward.1} parent=0 // pred_region
    _
  $region21: #{dnn_layer_forward.1} parent=0 // pred_fallthru
    _
  // Predicated region
  $region22: #{dnn_layer_forward.1} parent=0 // pred_check
    _
  $region23: #{dnn_layer_forward.1} parent=0 // pred_check_branch
    %22 = sbr.rel (0) target = $region25
  $region24: #{dnn_layer_forward.1} parent=0 // pred_region
    _
  $region25: #{dnn_layer_forward.1} parent=0 // pred_fallthru
    _
  %v24 = vld [vmem:[%s0] sm:$0xff]
  %v25 = vld [vmem:[%s0 + $0x8] sm:$0xff]
  %v26 = vld [vmem:[%s0 + $0x10] sm:$0xff]
  %v27 = vld [vmem:[%s0 + $0x18] sm:$0xff]
  %v28 = vld [vmem:[%s0 + $0x20] sm:$0xff]
  %v29 = vld [vmem:[%s0 + $0x28] sm:$0xff]
  %v30 = vld [vmem:[%s0 + $0x30] sm:$0xff]
  %v31 = vld [vmem:[%s0 + $0x38] sm:$0xff]
  %v32 = vld [vmem:[%s0 + $0x40] sm:$0xff]
  %v33 = vld [vmem:[%s0 + $0x48] sm:$0xff]
  %v34 = vld [vmem:[%s0 + $0x50] sm:$0xff]
  %v35 = vld [vmem:[%s0 + $0x58] sm:$0xff]
  %v36 = vld [vmem:[%s0 + $0x60] sm:$0xff]
  %v37 = vld [vmem:[%s0 + $0x68] sm:$0xff]
  %v38 = vld [vmem:[%s0 + $0x70] sm:$0xff]
  %v39 = vld [vmem:[%s0 + $0x78] sm:$0xff]
  %v40 = vpack.c.bf16 %v25, %v24
  %v41 = vpack.c.bf16 %v27, %v26
  %v42 = vpack.c.bf16 %v29, %v28
  %v43 = vpack.c.bf16 %v31, %v30
  %v44 = vpack.c.bf16 %v33, %v32
  %v45 = vpack.c.bf16 %v35, %v34
  %v46 = vpack.c.bf16 %v37, %v36
  %v47 = vpack.c.bf16 %v39, %v38
  %v48 = vld [vmem:[%s1] sm:$0xf]
  %v49 = vld [vmem:[%s1 + $0x4] sm:$0xf]
  %v50 = vld [vmem:[%s1 + $0x8] sm:$0xf]
  %v51 = vld [vmem:[%s1 + $0xc] sm:$0xf]
  %v52 = vld [vmem:[%s2] sm:$0xff]
  %v53 = vld [vmem:[%s2 + $0x8] sm:$0xff]
  %v54 = vld [vmem:[%s2 + $0x10] sm:$0xff]
  %v55 = vld [vmem:[%s2 + $0x18] sm:$0xff]
  %57 = vset.pattern.permute.xlu0 0
  %58 = vperm.xlu0 %57, %v52
  %v59 = vpop.permute.xlu0 %58
  %62 = vset.pattern.permute.xlu0 0
  %63 = vperm.xlu0 %62, %v53
  %v64 = vpop.permute.xlu0 %63
  %67 = vset.pattern.permute.xlu0 0
  %68 = vperm.xlu0 %67, %v54
  %v69 = vpop.permute.xlu0 %68
  %72 = vset.pattern.permute.xlu0 0
  %73 = vperm.xlu0 %72, %v55
  %v74 = vpop.permute.xlu0 %73
  %v80 = vunpack.c.l.b16 %v48
  %v81 = vunpack.c.l.b16 %v49
  %v82 = vunpack.c.l.b16 %v50
  %v83 = vunpack.c.l.b16 %v51
  %v84 = vpack.c.b16 %v81, %v80
  %v85 = vpack.c.b16 %v83, %v82
  %vm86 = vcmask 261120
  %v88 = vsel %vm86, %v84, 0
  %v91 = vsel %vm86, %v85, 0
  %v94 = vsel %vm86, %v40, 0
  %v97 = vsel %vm86, %v41, 0
  %v100 = vsel %vm86, %v42, 0
  %v103 = vsel %vm86, %v43, 0
  %v106 = vsel %vm86, %v44, 0
  %v109 = vsel %vm86, %v45, 0
  %v112 = vsel %vm86, %v46, 0
  %v115 = vsel %vm86, %v47, 0
  %117 = vmatpush.bf16.xpose.msra.mxu0 %v115
  %118 = vmatpush.bf16.xpose.msra.mxu0 %v112
  %119 = vmatpush.bf16.xpose.msra.mxu0 %v109
  %120 = vmatpush.bf16.xpose.msra.mxu0 %v106
  %121 = vmatpush.bf16.xpose.msra.mxu0 %v103
  %122 = vmatpush.bf16.xpose.msra.mxu0 %v100
  %123 = vmatpush.bf16.xpose.msra.mxu0 %v97
  %124 = vmatpush.bf16.xpose.msra.mxu0 %v94
  %125 = vmatmul.bf16.gmra.mxu0 %v88
  %v126 = vpop.f32.mrf.mxu0
  %v127 = vadd.f32 %v59, %v126
  %v128 = vpop.f32.mrf.mxu0
  %v129 = vadd.f32 %v64, %v128
  %130 = vmatmul.bf16.gmra.mxu0 %v91
  %v131 = vpop.f32.mrf.mxu0
  %v132 = vadd.f32 %v69, %v131
  %v133 = vpop.f32.mrf.mxu0
  %v134 = vadd.f32 %v74, %v133
  %135 = vdwg.mxu0
  %v136 = vmax.f32 %v127, 0.0
  %v137 = vmax.f32 %v129, 0.0
  %v138 = vmax.f32 %v132, 0.0
  %v139 = vmax.f32 %v134, 0.0
  %v140 = vpack.c.bf16 %v137, %v136
  %v141 = vpack.c.bf16 %v139, %v138
  %v142 = vld [vmem:[%s3] sm:$0xf]
  %v143 = vld [vmem:[%s3 + $0x4] sm:$0xf]
  %v144 = vld [vmem:[%s4] sm:$0xff]
  %v145 = vld [vmem:[%s4 + $0x8] sm:$0xff]
  %147 = vset.pattern.permute.xlu0 0
  %148 = vperm.xlu0 %147, %v144
  %v149 = vpop.permute.xlu0 %148
  %152 = vset.pattern.permute.xlu0 0
  %153 = vperm.xlu0 %152, %v145
  %v154 = vpop.permute.xlu0 %153
  %v158 = vunpack.c.l.b16 %v142
  %v159 = vunpack.c.l.b16 %v143
  %v160 = vpack.c.b16 %v159, %v158
  %v162 = vsel %vm86, %v160, 0
  %164 = vmatpush.bf16.msra.mxu0 0
  %165 = vmatpush.bf16.msra.mxu0 0
  %166 = vmatpush.bf16.msra.mxu0 0
  %167 = vmatpush.bf16.msra.mxu0 0
  %168 = vmatpush.bf16.msra.mxu0 0
  %169 = vmatpush.bf16.msra.mxu0 0
  %170 = vmatpush.bf16.msra.mxu0 %v141
  %171 = vmatpush.bf16.msra.mxu0 %v140
  %172 = vmatmul.bf16.gmra.mxu0 %v162
  %v173 = vpop.f32.mrf.mxu0
  %v174 = vadd.f32 %v149, %v173
  %v175 = vpop.f32.mrf.mxu0
  %v176 = vadd.f32 %v154, %v175
  %177 = vdwg.mxu0
  %v178 = vmax.f32 %v174, 0.0
  %v179 = vmax.f32 %v176, 0.0
  %v180 = vpack.c.bf16 %v179, %v178
  %v181 = vld [vmem:[%s5] sm:$0x1]
  %vm182 = vcmask 130048
  %v184 = vsel %vm182, %v181, 0
  %186 = vmatpush.bf16.msra.mxu0 0
  %187 = vmatpush.bf16.msra.mxu0 0
  %188 = vmatpush.bf16.msra.mxu0 0
  %189 = vmatpush.bf16.msra.mxu0 0
  %190 = vmatpush.bf16.msra.mxu0 0
  %191 = vmatpush.bf16.msra.mxu0 0
  %192 = vmatpush.bf16.msra.mxu0 0
  %193 = vmatpush.bf16.msra.mxu0 %v180
  %194 = vmatmul.bf16.gmra.mxu0 %v184
  %v195 = vpop.f32.mrf.mxu0
  %v196 = vadd.f32 0.0, %v195
  %v197 = vpop.f32.mrf.mxu0
  %198 = vdwg.mxu0
  %199 = vst [vmem:[%s6] sm:$0x1] %v196
  // Predicated region
  $region26: #{dnn_layer_forward.1} parent=0 // pred_check
    _
  $region27: #{dnn_layer_forward.1} parent=0 // pred_check_branch
    %201 = sbr.rel (0) target = $region29
  $region28: #{dnn_layer_forward.1} parent=0 // pred_region
    _
  $region29: #{dnn_layer_forward.1} parent=0 // pred_fallthru
    _
  // Predicated region
  $region30: #{dnn_layer_forward.1} parent=0 // pred_check
    _
  $region31: #{dnn_layer_forward.1} parent=0 // pred_check_branch
    %203 = sbr.rel (0) target = $region33
  $region32: #{dnn_layer_forward.1} parent=0 // pred_region
    _
  $region33: #{dnn_layer_forward.1} parent=0 // pred_fallthru
    _

</llo_original>
